<compile_context>
chip_gen: v7x
topology: tpu7x:2x2x1
jax: 0.10.0
libtpu: 0.0.40
codegen_flags: <defaults>
</compile_context>

<pallas_src>
import jax
import jax.numpy as jnp
import numpy as np
from jax.experimental import pallas as pl
from jax.experimental.pallas import tpu as pltpu


def _round_up(x, m):
    return (x + m - 1) // m * m


def _cdiv(a, b):
    return (a + b - 1) // b


# ----------------------------------------------------------------------------
# In-kernel math helpers
# ----------------------------------------------------------------------------
def _gelu_tanh(x):
    # tanh-form GELU: ~3x fewer VALU ops than an erf rational approximation
    # (the VALU is the saturating VLIW slot on v6e/v7x); tanh runs on the EUP
    # slot.  Deviates from exact erf GELU (torch.nn.GELU default) by <= ~3e-4.
    c = 0.7978845608028654  # sqrt(2/pi)
    return 0.5 * x * (1.0 + jnp.tanh(c * x * (1.0 + 0.044715 * x * x)))


# ----------------------------------------------------------------------------
# Pallas kernel: fused reward_head + reasoning_head + blend + tanh squash
# ----------------------------------------------------------------------------
_NT_DIMS = (((1,), (1,)), ((), ()))  # contract last dims (rhs "transposed")


def _reward_head_kernel(x_ref, w13_ref, b13_ref, wb_ref, bb_ref, out_ref):
    # x_ref:   (b_tile, H)     f32   activation tile (pipelined over the grid)
    # w13_ref: (H, hf)         bf16  fused [w1 | w3] first-stage weights (resident)
    # b13_ref: (1, hf)         f32   fused [b1 | b3] first-stage biases  (resident)
    # wb_ref:  (1, hf)         f32   0.7/0.3-blend + 1/3-prescale folded weight row
    # bb_ref:  (1,)            f32   folded second-stage bias (SMEM scalar)
    # out_ref: (1, 1, b_tile)  f32   lane-dense per-tile reward row
    x = x_ref[...].astype(jnp.bfloat16)        # bf16 MXU path; cast in-kernel

    # Single MXU pass for both heads' first projections, f32 accumulation.
    hg = jnp.dot(x, w13_ref[...], preferred_element_type=jnp.float32)
    hg = _gelu_tanh(hg + b13_ref[...])          # (b_tile, hf)

    # Second stage: both 1-wide heads, the 0.7/0.3 blend and the /3 prescale
    # are folded into wb.  NT contraction lands the result lane-dense.
    total = jax.lax.dot_general(wb_ref[...], hg, _NT_DIMS,
                                preferred_element_type=jnp.float32)  # (1, b_tile)
    total = total + bb_ref[0]
    out_ref[0] = 3.0 * jnp.tanh(total)          # = 3*tanh((0.7*a + 0.3*r)/3)


def pack_head_params(hp):
    """One-time head-parameter packing (hoisted out of the per-forward path).

    Concats W1|W3, casts to bf16, and folds the 0.7/0.3 blend and the 1/3
    tanh prescale into a single second-stage weight row / bias scalar.
    """
    w13 = jnp.concatenate([hp["w1"], hp["w3"]], axis=1).astype(jnp.bfloat16)
    b13 = jnp.concatenate([hp["b1"], hp["b3"]], axis=1).astype(jnp.float32)
    w_blend = jnp.concatenate([
        (0.7 / 3.0) * hp["w2"][:, 0],
        (0.3 / 3.0) * hp["w4"][:, 0]])[None, :].astype(jnp.float32)      # (1, hf)
    b_blend = jnp.reshape(
        (0.7 * hp["b2"][0, 0] + 0.3 * hp["b4"][0, 0]) / 3.0,
        (1,)).astype(jnp.float32)                                        # (1,)
    return dict(w13=w13, b13=b13, w_blend=w_blend, b_blend=b_blend)


def _pick_b_tile(B):
    if B <= 16:
        return B                    # one tiny tile; block dims == full array dims
    # Big tiles amortize the ~0.35 us per-grid-step overhead; an even number of
    # grid steps keeps v7x's two TensorCores balanced.  Cap at 1024 rows: at
    # H=768 that is ~3 MB x2 double-buffered x tiles + ~2.3 MB hg intermediate,
    # far under even v7x's 32 MiB default scoped VMEM.
    n_tiles = max(2, 2 * _cdiv(B, 2048))
    return min(1024, _round_up(_cdiv(B, n_tiles), 8))


def cot_reward_heads(pooled, packed, *, b_tile=None):
    """pooled: [B, H] f32 CLS features -> total_reward: [B] f32."""
    B, H = pooled.shape
    hf = packed["w13"].shape[1]
    if b_tile is None:
        b_tile = _pick_b_tile(B)
    n_tiles = _cdiv(B, b_tile)      # ragged last tile handled by Pallas masking
    resident = lambda i: (0, 0)     # weights: constant block -> single DMA

    out = pl.pallas_call(
        _reward_head_kernel,
        out_shape=jax.ShapeDtypeStruct((n_tiles, 1, b_tile), jnp.float32),
        grid=(n_tiles,),
        in_specs=[
            pl.BlockSpec((b_tile, H), lambda i: (i, 0)),        # x tile (pipelined)
            pl.BlockSpec((H, hf), resident),                    # W13 (resident)
            pl.BlockSpec((1, hf), resident),                    # b13
            pl.BlockSpec((1, hf), resident),                    # folded weight row
            pl.BlockSpec(memory_space=pltpu.MemorySpace.SMEM),  # folded bias
        ],
        out_specs=pl.BlockSpec((1, 1, b_tile), lambda i: (i, 0, 0)),
        compiler_params=pltpu.CompilerParams(
            dimension_semantics=("parallel",)),                 # megacore on v7x
    )(pooled, packed["w13"], packed["b13"], packed["w_blend"],
      packed["b_blend"])

    return out.reshape(-1)[:B]                                  # .squeeze(-1)


# ----------------------------------------------------------------------------
# Deterministic synthetic stand-in for the pretrained DeBERTa base model (glue)
# ----------------------------------------------------------------------------
# TODO(synk): the real module loads microsoft/deberta-v3-base; a pretrained
# checkpoint has no Pallas equivalent, so a tiny deterministic single-layer
# encoder produces the pooled CLS hidden state instead.
def make_encoder_params(key, vocab, seq, hidden):
    ks = jax.random.split(key, 8)
    s = 0.05
    return dict(
        tok_emb=s * jax.random.normal(ks[0], (vocab, hidden), jnp.float32),
        pos_emb=s * jax.random.normal(ks[1], (seq, hidden), jnp.float32),
        wq=s * jax.random.normal(ks[2], (hidden, hidden), jnp.float32),
        wk=s * jax.random.normal(ks[3], (hidden, hidden), jnp.float32),
        wv=s * jax.random.normal(ks[4], (hidden, hidden), jnp.float32),
        wo=s * jax.random.normal(ks[5], (hidden, hidden), jnp.float32),
        wf1=s * jax.random.normal(ks[6], (hidden, 4 * hidden), jnp.float32),
        wf2=s * jax.random.normal(ks[7], (4 * hidden, hidden), jnp.float32),
    )


def _layernorm(x, eps=1e-5):
    m = jnp.mean(x, axis=-1, keepdims=True)
    v = jnp.var(x, axis=-1, keepdims=True)
    return (x - m) * jax.lax.rsqrt(v + eps)


def synthetic_base_model(input_ids, attention_mask, p):
    # input_ids: [B, S] int32, attention_mask: [B, S] {0,1}
    x = p["tok_emb"][input_ids] + p["pos_emb"][None, :, :]           # [B, S, H]
    H = x.shape[-1]
    q = x @ p["wq"]
    k = x @ p["wk"]
    v = x @ p["wv"]
    scores = jnp.einsum("bqh,bkh->bqk", q, k) / jnp.sqrt(jnp.float32(H))
    scores = scores + (1.0 - attention_mask[:, None, :].astype(jnp.float32)) * -1e9
    attn = jax.nn.softmax(scores, axis=-1)
    x = _layernorm(x + jnp.einsum("bqk,bkh->bqh", attn, v) @ p["wo"])
    x = _layernorm(x + jax.nn.gelu(x @ p["wf1"], approximate=False) @ p["wf2"])
    return x[:, 0, :]                                                # pooled CLS [B, H]


def make_head_params(key, hidden):
    ks = jax.random.split(key, 8)
    s = 0.1
    h2, h4 = hidden // 2, hidden // 4
    return dict(
        w1=s * jax.random.normal(ks[0], (hidden, h2), jnp.float32),
        b1=s * jax.random.normal(ks[1], (1, h2), jnp.float32),
        w2=s * jax.random.normal(ks[2], (h2, 1), jnp.float32),
        b2=s * jax.random.normal(ks[3], (1, 1), jnp.float32),
        w3=s * jax.random.normal(ks[4], (hidden, h4), jnp.float32),
        b3=s * jax.random.normal(ks[5], (1, h4), jnp.float32),
        w4=s * jax.random.normal(ks[6], (h4, 1), jnp.float32),
        b4=s * jax.random.normal(ks[7], (1, 1), jnp.float32),
    )


def _heads_reference(pooled, hp):
    """Pure-JAX f32 reference of the head math (exact erf GELU, no folds)."""
    gelu = lambda z: jax.nn.gelu(z, approximate=False)
    answer = gelu(pooled @ hp["w1"] + hp["b1"]) @ hp["w2"] + hp["b2"]
    reasoning = gelu(pooled @ hp["w3"] + hp["b3"]) @ hp["w4"] + hp["b4"]
    total = 0.7 * answer[:, 0] + 0.3 * reasoning[:, 0]
    return 3.0 * jnp.tanh(total / 3.0)


@jax.jit
def cot_aware_reward_model(input_ids, attention_mask, enc_params, packed_head):
    pooled = synthetic_base_model(input_ids, attention_mask, enc_params)
    return cot_reward_heads(pooled, packed_head)


# ----------------------------------------------------------------------------
if __name__ == "__main__":
    B, S, H, V = 2, 8, 32, 64

    key = jax.random.PRNGKey(0)
    k_enc, k_head, k_ids = jax.random.split(key, 3)

    enc_params = make_encoder_params(k_enc, V, S, H)
    head_params = make_head_params(k_head, H)
    # One-time parameter packing, hoisted out of the per-forward path.
    packed_head = jax.tree.map(jax.block_until_ready,
                               pack_head_params(head_params))

    input_ids = jax.random.randint(k_ids, (B, S), 0, V, dtype=jnp.int32)
    attention_mask = jnp.ones((B, S), dtype=jnp.int32).at[1, S - 2:].set(0)

    total_reward = cot_aware_reward_model(input_ids, attention_mask,
                                          enc_params, packed_head)
    total_reward = jax.block_until_ready(total_reward)

    assert total_reward.shape == (B,)
    assert total_reward.dtype == jnp.float32
    assert bool(jnp.all(jnp.isfinite(total_reward)))
    assert bool(jnp.all(jnp.abs(total_reward) <= 3.0))  # 3*tanh(x/3) bound

    # Tolerance check vs. a pure-JAX f32 exact-erf-GELU reference.  The kernel
    # uses bf16 first-stage weights/activations and the tanh-form GELU, so the
    # expected deviation is a few 1e-3; 2e-2 is tight enough to catch real
    # numeric regressions (vs. the previous 1e-1).
    pooled = synthetic_base_model(input_ids, attention_mask, enc_params)
    ref = _heads_reference(pooled, head_params)
    assert np.allclose(np.asarray(total_reward), np.asarray(ref),
                       atol=2e-2, rtol=2e-2)

    print("KERNEL_OK")
</pallas_src>

<mosaic_0001>
module attributes {stable_mosaic.version = 11 : i64} {
  func.func @_reward_head_kernel(%arg0: i32, %arg1: memref<2x32xf32, #tpu.memory_space<vmem>>, %arg2: memref<32x24xbf16, #tpu.memory_space<vmem>>, %arg3: memref<1x24xf32, #tpu.memory_space<vmem>>, %arg4: memref<1x24xf32, #tpu.memory_space<vmem>>, %arg5: memref<1xf32, #tpu.memory_space<smem>>, %arg6: memref<1x1x2xf32, #tpu.memory_space<vmem>>) attributes {dimension_semantics = [#tpu.dimension_semantics<parallel>], iteration_bounds = array<i64: 1>, scalar_prefetch = 0 : i64, scratch_operands = 0 : i64, tpu.core_type = #tpu.core_type<tc>, window_params = [{transform_indices = @transform_0, window_bounds = array<i64: 2, 32>}, {pipeline_mode = #tpu.pipeline_mode<synchronous>, transform_indices = @transform_1, window_bounds = array<i64: 32, 24>}, {pipeline_mode = #tpu.pipeline_mode<synchronous>, transform_indices = @transform_2, window_bounds = array<i64: 1, 24>}, {pipeline_mode = #tpu.pipeline_mode<synchronous>, transform_indices = @transform_3, window_bounds = array<i64: 1, 24>}, {transform_indices = @transform_4, window_bounds = array<i64: 1>}, {transform_indices = @transform_5, window_bounds = array<i64: 1, 1, 2>}]} {
    %c0 = arith.constant 0 : index
    %c0_0 = arith.constant 0 : index
    %0 = vector.load %arg1[%c0, %c0_0] : memref<2x32xf32, #tpu.memory_space<vmem>>, vector<2x32xf32>
    %1 = arith.truncf %0 : vector<2x32xf32> to vector<2x32xbf16>
    %c0_1 = arith.constant 0 : index
    %c0_2 = arith.constant 0 : index
    %2 = vector.load %arg2[%c0_1, %c0_2] : memref<32x24xbf16, #tpu.memory_space<vmem>>, vector<32x24xbf16>
    %cst = arith.constant dense<0.000000e+00> : vector<2x24xf32>
    %3 = tpu.matmul %1, %2, %cst {dimension_numbers = #tpu.dot_dimension_numbers<[1], [0], [0], [1], [0, 0, 1, 1], [], []>} : vector<2x32xbf16>, vector<32x24xbf16>, vector<2x24xf32> -> vector<2x24xf32>
    %c0_3 = arith.constant 0 : index
    %c0_4 = arith.constant 0 : index
    %4 = vector.load %arg3[%c0_3, %c0_4] : memref<1x24xf32, #tpu.memory_space<vmem>>, vector<1x24xf32>
    %5 = vector.broadcast %4 : vector<1x24xf32> to vector<2x24xf32>
    %6 = arith.addf %3, %5 : vector<2x24xf32>
    %cst_5 = arith.constant 5.000000e-01 : f32
    %7 = vector.broadcast %cst_5 : f32 to vector<2x24xf32>
    %8 = arith.mulf %7, %6 : vector<2x24xf32>
    %cst_6 = arith.constant 0.797884583 : f32
    %9 = vector.broadcast %cst_6 : f32 to vector<2x24xf32>
    %10 = arith.mulf %9, %6 : vector<2x24xf32>
    %cst_7 = arith.constant 4.471500e-02 : f32
    %11 = vector.broadcast %cst_7 : f32 to vector<2x24xf32>
    %12 = arith.mulf %11, %6 : vector<2x24xf32>
    %13 = arith.mulf %12, %6 : vector<2x24xf32>
    %cst_8 = arith.constant 1.000000e+00 : f32
    %14 = vector.broadcast %cst_8 : f32 to vector<2x24xf32>
    %15 = arith.addf %14, %13 : vector<2x24xf32>
    %16 = arith.mulf %10, %15 : vector<2x24xf32>
    %17 = math.tanh %16 : vector<2x24xf32>
    %cst_9 = arith.constant 1.000000e+00 : f32
    %18 = vector.broadcast %cst_9 : f32 to vector<2x24xf32>
    %19 = arith.addf %18, %17 : vector<2x24xf32>
    %20 = arith.mulf %8, %19 : vector<2x24xf32>
    %c0_10 = arith.constant 0 : index
    %c0_11 = arith.constant 0 : index
    %21 = vector.load %arg4[%c0_10, %c0_11] : memref<1x24xf32, #tpu.memory_space<vmem>>, vector<1x24xf32>
    %cst_12 = arith.constant dense<0.000000e+00> : vector<1x2xf32>
    %22 = tpu.matmul %21, %20, %cst_12 {dimension_numbers = #tpu.dot_dimension_numbers<[1], [1], [0], [0], [0, 0, 1, 0], [], []>} : vector<1x24xf32>, vector<2x24xf32>, vector<1x2xf32> -> vector<1x2xf32>
    %c0_13 = arith.constant 0 : index
    %23 = memref.load %arg5[%c0_13] : memref<1xf32, #tpu.memory_space<smem>>
    %24 = vector.broadcast %23 : f32 to vector<1x2xf32>
    %25 = arith.addf %22, %24 : vector<1x2xf32>
    %26 = math.tanh %25 : vector<1x2xf32>
    %cst_14 = arith.constant 3.000000e+00 : f32
    %27 = vector.broadcast %cst_14 : f32 to vector<1x2xf32>
    %28 = arith.mulf %27, %26 : vector<1x2xf32>
    %c0_15 = arith.constant 0 : index
    %c0_16 = arith.constant 0 : index
    %c0_17 = arith.constant 0 : index
    %29 = vector.load %arg6[%c0_15, %c0_16, %c0_17] : memref<1x1x2xf32, #tpu.memory_space<vmem>>, vector<1x1x2xf32>
    %30 = vector.shape_cast %29 : vector<1x1x2xf32> to vector<1x2xf32>
    %31 = vector.shape_cast %28 : vector<1x2xf32> to vector<1x1x2xf32>
    tpu.vector_store %arg6[%c0_15, %c0_16, %c0_17], %31 {strides = array<i32>} : memref<1x1x2xf32, #tpu.memory_space<vmem>>, vector<1x1x2xf32>,
    return
  }
  func.func @transform_0(%arg0: i32) -> (i32, i32) {
    %c0_i32 = arith.constant 0 : i32
    %c0_i32_0 = arith.constant 0 : i32
    return %arg0, %c0_i32 : i32, i32
  }
  func.func @transform_1(%arg0: i32) -> (i32, i32) {
    %c0_i32 = arith.constant 0 : i32
    %c0_i32_0 = arith.constant 0 : i32
    %c0_i32_1 = arith.constant 0 : i32
    return %c0_i32, %c0_i32_0 : i32, i32
  }
  func.func @transform_2(%arg0: i32) -> (i32, i32) {
    %c0_i32 = arith.constant 0 : i32
    %c0_i32_0 = arith.constant 0 : i32
    %c0_i32_1 = arith.constant 0 : i32
    return %c0_i32, %c0_i32_0 : i32, i32
  }
  func.func @transform_3(%arg0: i32) -> (i32, i32) {
    %c0_i32 = arith.constant 0 : i32
    %c0_i32_0 = arith.constant 0 : i32
    %c0_i32_1 = arith.constant 0 : i32
    return %c0_i32, %c0_i32_0 : i32, i32
  }
  func.func @transform_4(%arg0: i32) -> i32 {
    %c0_i32 = arith.constant 0 : i32
    %c0_i32_0 = arith.constant 0 : i32
    return %c0_i32 : i32
  }
  func.func @transform_5(%arg0: i32) -> (i32, i32, i32) {
    %c0_i32 = arith.constant 0 : i32
    %c0_i32_0 = arith.constant 0 : i32
    %c0_i32_1 = arith.constant 0 : i32
    return %arg0, %c0_i32, %c0_i32_0 : i32, i32, i32
  }
}

</mosaic_0001>

<llo_original>
// kernel: cot_aware_reward_model.1
$region0: #{cot_aware_reward_model.1}
  #allocation0 [shape = 'u32[]', space=smem, size = 0x4, offset = 0x4, fixed_abs, tag = 'smem constant byte address 0x4 - core index']
  #allocation1 [shape = 'u32[144,128]{1,0:T(1,128)}', space=vmem, size = 0x12000, scoped, tag = 'internal scratch']
  #allocation2 [shape = 'f32[1]{0:T(128)S(6)}', space=smem, size = 0x200, scoped, tag = 'scoped memory for cot_aware_reward_model.1']
  %s0 = inlined_call_operand.vmem [shape: f32[2,32], index: 0, kind: input, shape index: {}]
  %s1 = inlined_call_operand.vmem [shape: bf16[32,24], index: 1, kind: input, shape index: {}]
  %s2 = inlined_call_operand.vmem [shape: f32[1,24], index: 2, kind: input, shape index: {}]
  %s3 = inlined_call_operand.vmem [shape: f32[1,24], index: 3, kind: input, shape index: {}]
  %s4 = inlined_call_operand.<no memory space> [shape: f32[1], index: 4, kind: input, shape index: {}]
  %s5 = inlined_call_operand.hbm [shape: f32[1,1,2], index: 5, kind: output, shape index: {}]
  %s6 = sld [smem:[#allocation0]]
  $region30: #{cot_aware_reward_model.1} parent=0
    _
  %s8 = ssub.s32 1, %s6
  %s9 = scalar_select 0, %s8, %s6
  %10 = sst [smem:[#allocation2]] %s4
  $region1: #{cot_aware_reward_model.1} parent=0
    #allocation3 [shape = 'u8[512]{0}', space=vmem, size = 0x400, scoped, tag = 'output window, operand 0, single buffered']
    #allocation4 [shape = 's32[1]{0}', space=sflag, size = 0x4, scoped, tag = 'scoped memory for cot_aware_reward_model.1']
    %11 = vsyncpa [#allocation4], 0
    // Predicated region
    $region2: #{cot_aware_reward_model.1} parent=1 // pred_check
      _
    $region3: #{cot_aware_reward_model.1} parent=1 // pred_check_branch
      %13 = sbr.rel (0) target = $region5
    $region4: #{cot_aware_reward_model.1} parent=1 // pred_region
      _
    $region5: #{cot_aware_reward_model.1} parent=1 // pred_fallthru
      _
    // Predicated region
    $region6: #{cot_aware_reward_model.1} parent=1 // pred_check
      _
    $region7: #{cot_aware_reward_model.1} parent=1 // pred_check_branch
      %15 = sbr.rel (0) target = $region9
    $region8: #{cot_aware_reward_model.1} parent=1 // pred_region
      _
    $region9: #{cot_aware_reward_model.1} parent=1 // pred_fallthru
      _
    // Predicated region
    $region10: #{cot_aware_reward_model.1} parent=1 // pred_check
      _
    $region11: #{cot_aware_reward_model.1} parent=1 // pred_check_branch
      %17 = sbr.rel (0) target = $region13
    $region12: #{cot_aware_reward_model.1} parent=1 // pred_region
      _
    $region13: #{cot_aware_reward_model.1} parent=1 // pred_fallthru
      _
    // Predicated region
    $region14: #{cot_aware_reward_model.1} parent=1 // pred_check
      _
    $region15: #{cot_aware_reward_model.1} parent=1 // pred_check_branch
      %19 = sbr.rel (0) target = $region17
    $region16: #{cot_aware_reward_model.1} parent=1 // pred_region
      _
    $region17: #{cot_aware_reward_model.1} parent=1 // pred_fallthru
      _
    // Predicated region
    $region18: #{cot_aware_reward_model.1} parent=1 // pred_check
      _
    $region19: #{cot_aware_reward_model.1} parent=1 // pred_check_branch
      %21 = sbr.rel (0) target = $region21
    $region20: #{cot_aware_reward_model.1} parent=1 // pred_region
      _
    $region21: #{cot_aware_reward_model.1} parent=1 // pred_fallthru
      _
    %v23 = vld [vmem:[%s0] sm:$0x3]
    %v24 = vpack.c.bf16 %v23, %v23
    %v25 = vld [vmem:[%s1] sm:$0xf]
    %v26 = vld [vmem:[%s1 + $0x4] sm:$0xf]
    %v27 = vld [vmem:[%s1 + $0x8] sm:$0xf]
    %v28 = vld [vmem:[%s1 + $0xc] sm:$0xf]
    %v29 = vld [vmem:[%s2] sm:$0x1]
    %v31 = vlaneseq
    %v32 = vshrl.u32 %v31, 7
    %v33 = vsub.s32 0, %v32
    %v34 = vrot.slane %v29, %v33
    %v40 = vunpack.c.l.b16 %v25
    %v41 = vunpack.c.l.b16 %v26
    %v42 = vunpack.c.l.b16 %v27
    %v43 = vunpack.c.l.b16 %v28
    %v44 = vpack.c.b16 %v41, %v40
    %v45 = vpack.c.b16 %v43, %v42
    %vm48 = vcmask 261120
    %v50 = vsel %vm48, %v24, 0
    %52 = vmatprep.subr.bf16.mxu0 0
    %53 = vmatpush1.bf16.msra.mxu0 %v44
    %54 = vmatprep.subr.bf16.mxu0 0
    %55 = vmatpush1.bf16.msra.mxu0 %v45
    %56 = vmatprep.subr.bf16.mxu0 0
    %57 = vmatpush1.bf16.msra.mxu0 0
    %58 = vmatprep.subr.bf16.mxu0 0
    %59 = vmatpush1.bf16.msra.mxu0 0
    %60 = vmatprep.subr.bf16.mxu0 0
    %61 = vmatpush1.bf16.msra.mxu0 0
    %62 = vmatprep.subr.bf16.mxu0 0
    %63 = vmatpush1.bf16.msra.mxu0 0
    %64 = vmatprep.subr.bf16.mxu0 0
    %65 = vmatpush1.bf16.msra.mxu0 0
    %66 = vmatprep.subr.bf16.mxu0 0
    %67 = vmatpush1.bf16.msra.mxu0 0
    %68 = vmatprep.subr.bf16.mxu0 0
    %69 = vmatpush1.bf16.msra.mxu0 0
    %70 = vmatprep.subr.bf16.mxu0 0
    %71 = vmatpush1.bf16.msra.mxu0 0
    %72 = vmatprep.subr.bf16.mxu0 0
    %73 = vmatpush1.bf16.msra.mxu0 0
    %74 = vmatprep.subr.bf16.mxu0 0
    %75 = vmatpush1.bf16.msra.mxu0 0
    %76 = vmatprep.subr.bf16.mxu0 0
    %77 = vmatpush1.bf16.msra.mxu0 0
    %78 = vmatprep.subr.bf16.mxu0 0
    %79 = vmatpush1.bf16.msra.mxu0 0
    %80 = vmatprep.subr.bf16.mxu0 0
    %81 = vmatpush1.bf16.msra.mxu0 0
    %82 = vmatprep.subr.bf16.mxu0 0
    %83 = vmatpush1.bf16.msra.mxu0 0
    %84 = vmatprep.mubr.bf16.mxu0 0
    %85 = vmatmul.mubr.bf16.gmra.mrb[0].mxu0 %v50
    %v86 = vpop.f32.mrb[0].mxu0
    %v87 = vadd.f32 %v34, %v86
    %v88 = vpop.f32.mrb[0].mxu0
    %v89 = vpop.f32.mrb[0].mxu0
    %v90 = vpop.f32.mrb[0].mxu0
    %91 = vdwg.mxu0
    %v92 = vmul.f32 %v87, 0.5
    %v93 = vmul.f32 %v87, 0.7978846
    %v94 = vmul.f32 %v87, 0.044715
    %v95 = vmul.f32 %v94, %v87
    %v96 = vadd.f32 %v95, 1.0
    %v97 = vmul.f32 %v93, %v96
    %v98 = vtanh.pop %v97
    %v99 = vadd.f32 %v98, 1.0
    %v100 = vmul.f32 %v92, %v99
    %v101 = vld [vmem:[%s3] sm:$0x1]
    %s102 = sld [smem:[#allocation2]]
    %v103 = vstv %s102
    %vm104 = vcmask 195584
    %v106 = vsel %vm104, %v101, 0
    %v109 = vsel %vm104, %v100, 0
    %111 = vmatprep.subr.mxu0 0.0
    %112 = vmatpush1.xpose.msra.mxu0 %v109
    %113 = vmatprep.subr.mxu0 0.0
    %114 = vmatpush1.xpose.msra.mxu0 0.0
    %115 = vmatprep.subr.mxu0 0.0
    %116 = vmatpush1.xpose.msra.mxu0 0.0
    %117 = vmatprep.subr.mxu0 0.0
    %118 = vmatpush1.xpose.msra.mxu0 0.0
    %119 = vmatprep.subr.mxu0 0.0
    %120 = vmatpush1.xpose.msra.mxu0 0.0
    %121 = vmatprep.subr.mxu0 0.0
    %122 = vmatpush1.xpose.msra.mxu0 0.0
    %123 = vmatprep.subr.mxu0 0.0
    %124 = vmatpush1.xpose.msra.mxu0 0.0
    %125 = vmatprep.subr.mxu0 0.0
    %126 = vmatpush1.xpose.msra.mxu0 0.0
    %127 = vmatprep.subr.mxu0 0.0
    %128 = vmatpush1.xpose.msra.mxu0 0.0
    %129 = vmatprep.subr.mxu0 0.0
    %130 = vmatpush1.xpose.msra.mxu0 0.0
    %131 = vmatprep.subr.mxu0 0.0
    %132 = vmatpush1.xpose.msra.mxu0 0.0
    %133 = vmatprep.subr.mxu0 0.0
    %134 = vmatpush1.xpose.msra.mxu0 0.0
    %135 = vmatprep.subr.mxu0 0.0
    %136 = vmatpush1.xpose.msra.mxu0 0.0
    %137 = vmatprep.subr.mxu0 0.0
    %138 = vmatpush1.xpose.msra.mxu0 0.0
    %139 = vmatprep.subr.mxu0 0.0
    %140 = vmatpush1.xpose.msra.mxu0 0.0
    %141 = vmatprep.subr.mxu0 0.0
    %142 = vmatpush1.xpose.msra.mxu0 0.0
    %143 = vmatprep.subr.mxu0 0.0
    %144 = vmatpush1.xpose.msra.mxu0 0.0
    %145 = vmatprep.subr.mxu0 0.0
    %146 = vmatpush1.xpose.msra.mxu0 0.0
    %147 = vmatprep.subr.mxu0 0.0
    %148 = vmatpush1.xpose.msra.mxu0 0.0
    %149 = vmatprep.subr.mxu0 0.0
    %150 = vmatpush1.xpose.msra.mxu0 0.0
    %151 = vmatprep.subr.mxu0 0.0
    %152 = vmatpush1.xpose.msra.mxu0 0.0
    %153 = vmatprep.subr.mxu0 0.0
    %154 = vmatpush1.xpose.msra.mxu0 0.0
    %155 = vmatprep.subr.mxu0 0.0
    %156 = vmatpush1.xpose.msra.mxu0 0.0
    %157 = vmatprep.subr.mxu0 0.0
    %158 = vmatpush1.xpose.msra.mxu0 0.0
    %159 = vmatprep.subr.mxu0 0.0
    %160 = vmatpush1.xpose.msra.mxu0 0.0
    %161 = vmatprep.subr.mxu0 0.0
    %162 = vmatpush1.xpose.msra.mxu0 0.0
    %163 = vmatprep.subr.mxu0 0.0
    %164 = vmatpush1.xpose.msra.mxu0 0.0
    %165 = vmatprep.subr.mxu0 0.0
    %166 = vmatpush1.xpose.msra.mxu0 0.0
    %167 = vmatprep.subr.mxu0 0.0
    %168 = vmatpush1.xpose.msra.mxu0 0.0
    %169 = vmatprep.subr.mxu0 0.0
    %170 = vmatpush1.xpose.msra.mxu0 0.0
    %171 = vmatprep.subr.mxu0 0.0
    %172 = vmatpush1.xpose.msra.mxu0 0.0
    %173 = vmatprep.subr.mxu0 0.0
    %174 = vmatpush1.xpose.msra.mxu0 0.0
    %175 = vmatprep.mubr.f32.mxu0 0.0
    %176 = vmatmul.mubr.f32.gmra.mrb[0].mxu0 %v106
    %v177 = vpop.f32.mrb[0].mxu0
    %v178 = vadd.f32 %v103, %v177
    %v179 = vpop.f32.mrb[0].mxu0
    %180 = vdwg.mxu0
    %v181 = vtanh.pop %v178
    %v182 = vmul.f32 %v181, 3.0
    %vm183 = vcmask 8192
    %184 = vst.msk [vmem:[#allocation3] sm:$0x1] %vm183, %v182
    // Predicated region
    $region22: #{cot_aware_reward_model.1} parent=1 // pred_check
      _
    $region23: #{cot_aware_reward_model.1} parent=1 // pred_check_branch
      %186 = sbr.rel (0) target = $region25
    $region24: #{cot_aware_reward_model.1} parent=1 // pred_region
      %s188 = ssub.s32 16, 16
      %189 = vsyncadd [#allocation4], %s188
      %s191 = sshll.u32 [#allocation3], 4
      %s192 = int_to_ptr.vmem [resolvable:$true] %s191
      %194 = dma.vmem_to_hbm [thread:$0]  %s192, 16, %s5, [#allocation4]
    $region25: #{cot_aware_reward_model.1} parent=1 // pred_fallthru
      _
    // Predicated region
    $region26: #{cot_aware_reward_model.1} parent=1 // pred_check
      _
    $region27: #{cot_aware_reward_model.1} parent=1 // pred_check_branch
      %196 = sbr.rel (0) target = $region29
    $region28: #{cot_aware_reward_model.1} parent=1 // pred_region
      %197 = dma.done [#allocation4], 16
    $region29: #{cot_aware_reward_model.1} parent=1 // pred_fallthru
      _
    %198 = vsyncpa [#allocation4], 1

</llo_original>
